<compile_context>
chip_gen: v7x
topology: tpu7x:2x2x1
jax: 0.10.0
libtpu: 0.0.40
codegen_flags: <defaults>
</compile_context>

<pallas_src>
import functools

import jax
import jax.numpy as jnp
from jax.experimental import pallas as pl
from jax.experimental.pallas import tpu as pltpu


def _round_up(v, m):
    return (v + m - 1) // m * m


def _choose_tile_rows(n, c, x_itemsize, target_bytes=6 * 1024 * 1024):
    """Rows per grid step: big enough to approach the HBM roofline, small
    enough that the double-buffered (x, y) tiles fit v7x's 64 MiB VMEM."""
    padded_c = _round_up(c, 128)
    # x tile bytes/row (lane-padded) + int32 label row padded to 128 lanes.
    per_row = padded_c * x_itemsize + 128 * 4
    tn = max(8, (target_bytes // per_row) // 8 * 8)
    if n <= tn:
        return int(n)          # single tile: full array dim is always legal
    return int(tn)


def focal_loss_kernel(x_ref, y_ref, w_ref, out_ref, num_ref, den_ref, *,
                      gamma, n_total):
    i = pl.program_id(0)

    @pl.when(i == 0)
    def _init():
        num_ref[...] = jnp.zeros_like(num_ref)
        den_ref[...] = jnp.zeros_like(den_ref)

    x = x_ref[...].astype(jnp.float32)               # (TN, C)
    y = y_ref[...]                                   # (TN, 1) int32
    w = w_ref[...].astype(jnp.float32)               # (1, C)
    tn = x.shape[0]

    # Mask rows of the (possibly padded) last tile that fall past logical N.
    row = jax.lax.broadcasted_iota(jnp.int32, (tn, 1), 0)
    valid = (i * tn + row) < n_total                 # (TN, 1) bool

    # Numerically-stable logsumexp along the class (lane) axis.
    m = jnp.max(x, axis=-1, keepdims=True)           # (TN, 1)
    z = x - m
    lse = jnp.log(jnp.sum(jnp.exp(z), axis=-1, keepdims=True))   # (TN, 1)

    # Fused one-hot "gather": nll_i = lse_i - z[i, y_i], wy_i = w[y_i].
    # (No full log_probs tile is formed.)
    cls_idx = jax.lax.broadcasted_iota(jnp.int32, x.shape, 1)    # (TN, C)
    onehot = (cls_idx == y).astype(jnp.float32)                  # (TN, C)
    z_y = jnp.sum(onehot * z, axis=-1, keepdims=True)            # (TN, 1)
    wy = jnp.sum(onehot * w, axis=-1, keepdims=True)             # (TN, 1)

    nll = jnp.where(valid, lse - z_y, 0.0)
    wy = jnp.where(valid, wy, 0.0)

    # Weighted-CE partial sums, accumulated across the N grid axis.
    num_ref[...] += jnp.sum(wy * nll).reshape(1, 1)
    den_ref[...] += jnp.sum(wy).reshape(1, 1)

    @pl.when(i == pl.num_programs(0) - 1)
    def _finalize():
        # NOTE: den can be 0 if every selected class weight is 0 (same edge
        # case as PyTorch's weighted CrossEntropyLoss with 'mean').
        logp = num_ref[...] / den_ref[...]           # (1, 1)
        p = jnp.exp(-logp)
        one_minus_p = 1.0 - p
        g = float(gamma)
        if g == 0.0:
            mod = jnp.ones_like(logp)
        elif g.is_integer() and 0.0 < g <= 4.0:
            mod = one_minus_p
            for _ in range(int(g) - 1):
                mod = mod * one_minus_p
        else:
            mod = jnp.power(one_minus_p, g)
        out_ref[...] = (mod * logp).astype(out_ref.dtype)


def focal_loss(x, y, weight, gamma=2.0, tile_rows=None):
    """x: (N, C) float (f32 or bf16) logits; y: (N,) int labels; weight: (C,)."""
    N, C = x.shape
    y2 = y.astype(jnp.int32).reshape(N, 1)
    w2 = weight.astype(jnp.float32).reshape(1, C)

    if tile_rows is None:
        tile_rows = _choose_tile_rows(N, C, jnp.dtype(x.dtype).itemsize)
    tile_rows = int(tile_rows)
    grid = pl.cdiv(N, tile_rows)

    kernel = functools.partial(focal_loss_kernel, gamma=float(gamma), n_total=N)

    out = pl.pallas_call(
        kernel,
        out_shape=jax.ShapeDtypeStruct((1, 1), jnp.float32),
        grid=(grid,),
        in_specs=[
            pl.BlockSpec((tile_rows, C), lambda i: (i, 0)),   # logits tile
            pl.BlockSpec((tile_rows, 1), lambda i: (i, 0)),   # labels tile
            pl.BlockSpec((1, C), lambda i: (0, 0)),           # class weights
        ],
        out_specs=pl.BlockSpec((1, 1), lambda i: (0, 0)),     # scalar loss
        scratch_shapes=[
            pltpu.VMEM((1, 1), jnp.float32),                  # ce numerator
            pltpu.VMEM((1, 1), jnp.float32),                  # ce denominator
        ],
        compiler_params=pltpu.CompilerParams(
            dimension_semantics=("arbitrary",),               # accumulator-resident axis
            vmem_limit_bytes=32 * 1024 * 1024,
        ),
    )(x, y2, w2)
    return out[0, 0]


def focal_loss_ref(x, y, weight, gamma=2.0):
    """Pure-JAX reference mirroring the PyTorch module."""
    x = x.astype(jnp.float32)
    log_probs = jax.nn.log_softmax(x, axis=-1)
    nll = -jnp.take_along_axis(log_probs, y[:, None].astype(jnp.int32), axis=-1)[:, 0]
    w_y = weight.astype(jnp.float32)[y]
    logp = jnp.sum(w_y * nll) / jnp.sum(w_y)
    p = jnp.exp(-logp)
    return jnp.power(1.0 - p, gamma) * logp


if __name__ == "__main__":
    gamma = 2.0
    key = jax.random.PRNGKey(0)
    kx, ky = jax.random.split(key)

    # Small (N, C) logits + integer labels, consistent with CrossEntropy usage.
    N, C = 20, 32
    x = jax.random.normal(kx, (N, C), dtype=jnp.float32)
    y = jax.random.randint(ky, (N,), 0, C, dtype=jnp.int32)
    weight = jnp.linspace(0.5, 1.5, C, dtype=jnp.float32)  # stand-in ctor weights

    ref = focal_loss_ref(x, y, weight, gamma=gamma)

    # Force a small tile so the test exercises multi-step streaming, the
    # resident accumulator, and the padded-last-tile mask (N=20, TN=8).
    out = jax.block_until_ready(focal_loss(x, y, weight, gamma=gamma, tile_rows=8))
    assert jnp.allclose(out, ref, rtol=1e-5, atol=1e-5), (out, ref)

    # Also run with automatic tile sizing (single-tile path at this shape).
    out2 = jax.block_until_ready(focal_loss(x, y, weight, gamma=gamma))
    assert jnp.allclose(out2, ref, rtol=1e-5, atol=1e-5), (out2, ref)

    print("KERNEL_OK")
</pallas_src>

<mosaic_0001>
module attributes {stable_mosaic.version = 11 : i64} {
  func.func @focal_loss_kernel(%arg0: i32, %arg1: memref<8x32xf32, #tpu.memory_space<vmem>>, %arg2: memref<8x1xi32, #tpu.memory_space<vmem>>, %arg3: memref<1x32xf32, #tpu.memory_space<vmem>>, %arg4: memref<1x1xf32, #tpu.memory_space<vmem>>, %arg5: memref<1x1xf32, #tpu.memory_space<vmem>>, %arg6: memref<1x1xf32, #tpu.memory_space<vmem>>) attributes {dimension_semantics = [#tpu.dimension_semantics<arbitrary>], iteration_bounds = array<i64: 3>, scalar_prefetch = 0 : i64, scratch_operands = 2 : i64, tpu.core_type = #tpu.core_type<tc>, window_params = [{transform_indices = @transform_0, window_bounds = array<i64: 8, 32>}, {transform_indices = @transform_1, window_bounds = array<i64: 8, 1>}, {pipeline_mode = #tpu.pipeline_mode<synchronous>, transform_indices = @transform_2, window_bounds = array<i64: 1, 32>}, {pipeline_mode = #tpu.pipeline_mode<synchronous>, transform_indices = @transform_3, window_bounds = array<i64: 1, 1>}]} {
    %c0_i32 = arith.constant 0 : i32
    %0 = arith.cmpi eq, %arg0, %c0_i32 : i32
    %1 = arith.extui %0 : i1 to i32
    %c0_i32_0 = arith.constant 0 : i32
    %2 = arith.cmpi ne, %1, %c0_i32_0 : i32
    scf.if %2 {
      %cst_22 = arith.constant 0.000000e+00 : f32
      %57 = vector.broadcast %cst_22 : f32 to vector<1x1xf32>
      %c0_23 = arith.constant 0 : index
      %c0_24 = arith.constant 0 : index
      %58 = vector.load %arg5[%c0_23, %c0_24] : memref<1x1xf32, #tpu.memory_space<vmem>>, vector<1x1xf32>
      tpu.vector_store %arg5[%c0_23, %c0_24], %57 {strides = array<i32>} : memref<1x1xf32, #tpu.memory_space<vmem>>, vector<1x1xf32>,
      %cst_25 = arith.constant 0.000000e+00 : f32
      %59 = vector.broadcast %cst_25 : f32 to vector<1x1xf32>
      %c0_26 = arith.constant 0 : index
      %c0_27 = arith.constant 0 : index
      %60 = vector.load %arg6[%c0_26, %c0_27] : memref<1x1xf32, #tpu.memory_space<vmem>>, vector<1x1xf32>
      tpu.vector_store %arg6[%c0_26, %c0_27], %59 {strides = array<i32>} : memref<1x1xf32, #tpu.memory_space<vmem>>, vector<1x1xf32>,
    } else {
    }
    %c0 = arith.constant 0 : index
    %c0_1 = arith.constant 0 : index
    %3 = vector.load %arg1[%c0, %c0_1] : memref<8x32xf32, #tpu.memory_space<vmem>>, vector<8x32xf32>
    %c0_2 = arith.constant 0 : index
    %c0_3 = arith.constant 0 : index
    %4 = vector.load %arg2[%c0_2, %c0_3] : memref<8x1xi32, #tpu.memory_space<vmem>>, vector<8x1xi32>
    %c0_4 = arith.constant 0 : index
    %c0_5 = arith.constant 0 : index
    %5 = vector.load %arg3[%c0_4, %c0_5] : memref<1x32xf32, #tpu.memory_space<vmem>>, vector<1x32xf32>
    %6 = tpu.iota {dimensions = array<i32: 0>} : vector<8x1xi32>
    %c8_i32 = arith.constant 8 : i32
    %7 = arith.muli %arg0, %c8_i32 : i32
    %8 = vector.broadcast %7 : i32 to vector<8x1xi32>
    %9 = arith.addi %8, %6 : vector<8x1xi32>
    %c20_i32 = arith.constant 20 : i32
    %10 = vector.broadcast %c20_i32 : i32 to vector<8x1xi32>
    %11 = arith.cmpi slt, %9, %10 : vector<8x1xi32>
    %cst = arith.constant dense<0xFF800000> : vector<8xf32>
    %12 = vector.multi_reduction <maximumf>, %3, %cst [1] : vector<8x32xf32> to vector<8xf32>
    %13 = vector.shape_cast %12 : vector<8xf32> to vector<8x1xf32>
    %14 = vector.broadcast %13 : vector<8x1xf32> to vector<8x32xf32>
    %15 = arith.subf %3, %14 : vector<8x32xf32>
    %16 = math.exp %15 : vector<8x32xf32>
    %cst_6 = arith.constant dense<0.000000e+00> : vector<8xf32>
    %17 = vector.multi_reduction <add>, %16, %cst_6 [1] : vector<8x32xf32> to vector<8xf32>
    %18 = vector.shape_cast %17 : vector<8xf32> to vector<8x1xf32>
    %19 = math.log %18 : vector<8x1xf32>
    %20 = tpu.iota {dimensions = array<i32: 1>} : vector<8x32xi32>
    %21 = vector.broadcast %4 : vector<8x1xi32> to vector<8x32xi32>
    %22 = arith.cmpi eq, %20, %21 : vector<8x32xi32>
    %23 = arith.extui %22 : vector<8x32xi1> to vector<8x32xi32>
    %24 = arith.sitofp %23 : vector<8x32xi32> to vector<8x32xf32>
    %25 = arith.mulf %24, %15 : vector<8x32xf32>
    %cst_7 = arith.constant dense<0.000000e+00> : vector<8xf32>
    %26 = vector.multi_reduction <add>, %25, %cst_7 [1] : vector<8x32xf32> to vector<8xf32>
    %27 = vector.shape_cast %26 : vector<8xf32> to vector<8x1xf32>
    %28 = vector.broadcast %5 : vector<1x32xf32> to vector<8x32xf32>
    %29 = arith.mulf %24, %28 : vector<8x32xf32>
    %cst_8 = arith.constant dense<0.000000e+00> : vector<8xf32>
    %30 = vector.multi_reduction <add>, %29, %cst_8 [1] : vector<8x32xf32> to vector<8xf32>
    %31 = vector.shape_cast %30 : vector<8xf32> to vector<8x1xf32>
    %32 = arith.subf %19, %27 : vector<8x1xf32>
    %cst_9 = arith.constant 0.000000e+00 : f32
    %33 = vector.broadcast %cst_9 : f32 to vector<8x1xf32>
    %34 = arith.select %11, %32, %33 : vector<8x1xi1>, vector<8x1xf32>
    %cst_10 = arith.constant 0.000000e+00 : f32
    %35 = vector.broadcast %cst_10 : f32 to vector<8x1xf32>
    %36 = arith.select %11, %31, %35 : vector<8x1xi1>, vector<8x1xf32>
    %c0_11 = arith.constant 0 : index
    %c0_12 = arith.constant 0 : index
    %37 = vector.load %arg5[%c0_11, %c0_12] : memref<1x1xf32, #tpu.memory_space<vmem>>, vector<1x1xf32>
    %38 = arith.mulf %36, %34 : vector<8x1xf32>
    %39 = vector.shape_cast %38 : vector<8x1xf32> to vector<1x8x1xf32>
    %cst_13 = arith.constant dense<0.000000e+00> : vector<1xf32>
    %40 = vector.multi_reduction <add>, %39, %cst_13 [1, 2] : vector<1x8x1xf32> to vector<1xf32>
    %41 = vector.shape_cast %40 : vector<1xf32> to vector<1x1x1xf32>
    %42 = vector.extract %41[0, 0, 0] : f32 from vector<1x1x1xf32>
    %43 = vector.broadcast %42 : f32 to vector<1x1xf32>
    %44 = arith.addf %37, %43 : vector<1x1xf32>
    %c0_14 = arith.constant 0 : index
    %c0_15 = arith.constant 0 : index
    %45 = vector.load %arg5[%c0_14, %c0_15] : memref<1x1xf32, #tpu.memory_space<vmem>>, vector<1x1xf32>
    tpu.vector_store %arg5[%c0_14, %c0_15], %44 {strides = array<i32>} : memref<1x1xf32, #tpu.memory_space<vmem>>, vector<1x1xf32>,
    %c0_16 = arith.constant 0 : index
    %c0_17 = arith.constant 0 : index
    %46 = vector.load %arg6[%c0_16, %c0_17] : memref<1x1xf32, #tpu.memory_space<vmem>>, vector<1x1xf32>
    %47 = vector.shape_cast %36 : vector<8x1xf32> to vector<1x8x1xf32>
    %cst_18 = arith.constant dense<0.000000e+00> : vector<1xf32>
    %48 = vector.multi_reduction <add>, %47, %cst_18 [1, 2] : vector<1x8x1xf32> to vector<1xf32>
    %49 = vector.shape_cast %48 : vector<1xf32> to vector<1x1x1xf32>
    %50 = vector.extract %49[0, 0, 0] : f32 from vector<1x1x1xf32>
    %51 = vector.broadcast %50 : f32 to vector<1x1xf32>
    %52 = arith.addf %46, %51 : vector<1x1xf32>
    %c0_19 = arith.constant 0 : index
    %c0_20 = arith.constant 0 : index
    %53 = vector.load %arg6[%c0_19, %c0_20] : memref<1x1xf32, #tpu.memory_space<vmem>>, vector<1x1xf32>
    tpu.vector_store %arg6[%c0_19, %c0_20], %52 {strides = array<i32>} : memref<1x1xf32, #tpu.memory_space<vmem>>, vector<1x1xf32>,
    %c2_i32 = arith.constant 2 : i32
    %54 = arith.cmpi eq, %arg0, %c2_i32 : i32
    %55 = arith.extui %54 : i1 to i32
    %c0_i32_21 = arith.constant 0 : i32
    %56 = arith.cmpi ne, %55, %c0_i32_21 : i32
    scf.if %56 {
      %c0_22 = arith.constant 0 : index
      %c0_23 = arith.constant 0 : index
      %57 = vector.load %arg5[%c0_22, %c0_23] : memref<1x1xf32, #tpu.memory_space<vmem>>, vector<1x1xf32>
      %c0_24 = arith.constant 0 : index
      %c0_25 = arith.constant 0 : index
      %58 = vector.load %arg6[%c0_24, %c0_25] : memref<1x1xf32, #tpu.memory_space<vmem>>, vector<1x1xf32>
      %59 = arith.divf %57, %58 : vector<1x1xf32>
      %cst_26 = arith.constant 0.000000e+00 : f32
      %60 = vector.broadcast %cst_26 : f32 to vector<1x1xf32>
      %61 = arith.subf %60, %59 : vector<1x1xf32>
      %62 = math.exp %61 : vector<1x1xf32>
      %cst_27 = arith.constant 1.000000e+00 : f32
      %63 = vector.broadcast %cst_27 : f32 to vector<1x1xf32>
      %64 = arith.subf %63, %62 : vector<1x1xf32>
      %65 = arith.mulf %64, %64 : vector<1x1xf32>
      %66 = arith.mulf %65, %59 : vector<1x1xf32>
      %c0_28 = arith.constant 0 : index
      %c0_29 = arith.constant 0 : index
      %67 = vector.load %arg4[%c0_28, %c0_29] : memref<1x1xf32, #tpu.memory_space<vmem>>, vector<1x1xf32>
      tpu.vector_store %arg4[%c0_28, %c0_29], %66 {strides = array<i32>} : memref<1x1xf32, #tpu.memory_space<vmem>>, vector<1x1xf32>,
    } else {
    }
    return
  }
  func.func @transform_0(%arg0: i32) -> (i32, i32) {
    %c0_i32 = arith.constant 0 : i32
    %c0_i32_0 = arith.constant 0 : i32
    return %arg0, %c0_i32 : i32, i32
  }
  func.func @transform_1(%arg0: i32) -> (i32, i32) {
    %c0_i32 = arith.constant 0 : i32
    %c0_i32_0 = arith.constant 0 : i32
    return %arg0, %c0_i32 : i32, i32
  }
  func.func @transform_2(%arg0: i32) -> (i32, i32) {
    %c0_i32 = arith.constant 0 : i32
    %c0_i32_0 = arith.constant 0 : i32
    %c0_i32_1 = arith.constant 0 : i32
    return %c0_i32, %c0_i32_0 : i32, i32
  }
  func.func @transform_3(%arg0: i32) -> (i32, i32) {
    %c0_i32 = arith.constant 0 : i32
    %c0_i32_0 = arith.constant 0 : i32
    %c0_i32_1 = arith.constant 0 : i32
    return %c0_i32, %c0_i32_0 : i32, i32
  }
}

</mosaic_0001>

<llo_original>
// kernel: tpu_custom_call.1
$region0: #{tpu_custom_call.1}
  #allocation0 [shape = 'u32[]', space=smem, size = 0x4, offset = 0x4, fixed_abs, tag = 'smem constant byte address 0x4 - core index']
  #allocation1 [shape = 'u32[144,128]{1,0:T(1,128)}', space=vmem, size = 0x12000, scoped, tag = 'internal scratch']
  #allocation2 [shape = 'f32[1,1]{1,0:T(1,128)}', space=vmem, size = 0x200, scoped, tag = 'scratch operand']
  #allocation3 [shape = 'f32[1,1]{1,0:T(1,128)}', space=vmem, size = 0x200, scoped, tag = 'scratch operand']
  %s0 = inlined_call_operand.vmem [shape: f32[20,32], index: 0, kind: input, shape index: {}]
  %s1 = inlined_call_operand.vmem [shape: s32[20,1], index: 1, kind: input, shape index: {}]
  %s2 = inlined_call_operand.vmem [shape: f32[1,32], index: 2, kind: input, shape index: {}]
  %s3 = inlined_call_operand.hbm [shape: f32[1,1], index: 3, kind: output, shape index: {}]
  %s4 = sld [smem:[#allocation0]]
  $region53: #{tpu_custom_call.1} parent=0
    _
  %s6 = ssub.s32 1, %s4
  %s7 = scalar_select 0, %s6, %s4
  $region1: #{tpu_custom_call.1} parent=0
    #allocation4 [shape = 'u8[512]{0}', space=vmem, size = 0x400, scoped, tag = 'output window, operand 0, single buffered']
    #allocation5 [shape = 's32[2]{0}', space=sflag, size = 0x8, scoped, tag = 'scoped memory for tpu_custom_call.1']
    %8 = vsyncpa [#allocation5], 0
    loop: start=0, step=1, limit=5
    $region2: #{tpu_custom_call.1} parent=1 // loop_pre_header
      _
    $region3: #{tpu_custom_call.1} parent=1 // loop_header
      %s10 = sphi 0, %s14
      %p11 = scmp.ge.s32.totalorder %s10, 5
      %s20 = sphi 0, %s22
      %s23 = sphi 0, %s20
      %s24 = sphi 0, %s23
      %s40 = sphi 0, %s24
      %s46 = sphi 0, %s48
      %s49 = sphi 0, %s46
      %s50 = sphi 0, %s49
      %s66 = sphi 0, %s50
      %s70 = sphi 0, %s70
      %s72 = sphi 0, %s70
      %s73 = sphi 0, %s72
      %s87 = sphi 0, %s73
      %s91 = sphi 0, %s91
      %s93 = sphi 0, %s91
      %s94 = sphi 0, %s93
      %s108 = sphi 0, %s94
    $region4: #{tpu_custom_call.1} parent=1 // loop_header_branch
      %13 = sbr.rel (%p11) target = $region8
    $region5: #{tpu_custom_call.1} parent=1 // loop_body
      %s15 = ssub.s32 %s10, 1
      %s16 = ssub.s32 %s10, 2
      %s17 = sadd.s32 %s10, 1
      %s18 = ssub.s32 %s10, %s17
      %p19 = scmp.eq.s32.totalorder %s18, 0
      %s21 = sadd.s32 %s20, 1
      %s22 = scalar_select %p19, %s20, %s21
      %p25 = pneg %p19
      %p26 = scmp.eq.s32.totalorder %s10, 2
      %p27 = por %p25, %p26
      %p28 = scmp.ne.s32.totalorder %s20, %s23
      %p29 = scmp.eq.s32.totalorder %s10, 0
      %p30 = por %p28, %p29
      %p31 = scmp.ne.s32.totalorder %s20, %s23
      %p32 = scmp.eq.s32.totalorder %s15, 2
      %p33 = por %p31, %p32
      %p34 = scmp.ne.s32.totalorder %s23, %s24
      %p35 = scmp.eq.s32.totalorder %s15, 0
      %p36 = por %p34, %p35
      %p37 = scmp.ne.s32.totalorder %s23, %s24
      %p38 = scmp.eq.s32.totalorder %s16, 2
      %p39 = por %p37, %p38
      %p41 = scmp.ne.s32.totalorder %s24, %s40
      %p42 = scmp.eq.s32.totalorder %s16, 0
      %p43 = por %p41, %p42
      %s44 = ssub.s32 %s10, %s17
      %p45 = scmp.eq.s32.totalorder %s44, 0
      %s47 = sadd.s32 %s46, 1
      %s48 = scalar_select %p45, %s46, %s47
      %p51 = pneg %p45
      %p52 = scmp.eq.s32.totalorder %s10, 2
      %p53 = por %p51, %p52
      %p54 = scmp.ne.s32.totalorder %s46, %s49
      %p55 = scmp.eq.s32.totalorder %s10, 0
      %p56 = por %p54, %p55
      %p57 = scmp.ne.s32.totalorder %s46, %s49
      %p58 = scmp.eq.s32.totalorder %s15, 2
      %p59 = por %p57, %p58
      %p60 = scmp.ne.s32.totalorder %s49, %s50
      %p61 = scmp.eq.s32.totalorder %s15, 0
      %p62 = por %p60, %p61
      %p63 = scmp.ne.s32.totalorder %s49, %s50
      %p64 = scmp.eq.s32.totalorder %s16, 2
      %p65 = por %p63, %p64
      %p67 = scmp.ne.s32.totalorder %s50, %s66
      %p68 = scmp.eq.s32.totalorder %s16, 0
      %p69 = por %p67, %p68
      %s71 = sadd.s32 %s70, 1
      %p74 = scmp.eq.s32.totalorder %s10, 2
      %p75 = scmp.ne.s32.totalorder %s70, %s72
      %p76 = scmp.eq.s32.totalorder %s10, 0
      %p77 = por %p75, %p76
      %p78 = scmp.ne.s32.totalorder %s70, %s72
      %p79 = scmp.eq.s32.totalorder %s15, 2
      %p80 = por %p78, %p79
      %p81 = scmp.ne.s32.totalorder %s72, %s73
      %p82 = scmp.eq.s32.totalorder %s15, 0
      %p83 = por %p81, %p82
      %p84 = scmp.ne.s32.totalorder %s72, %s73
      %p85 = scmp.eq.s32.totalorder %s16, 2
      %p86 = por %p84, %p85
      %p88 = scmp.ne.s32.totalorder %s73, %s87
      %p89 = scmp.eq.s32.totalorder %s16, 0
      %p90 = por %p88, %p89
      %s92 = sadd.s32 %s91, 1
      %p95 = scmp.eq.s32.totalorder %s10, 2
      %p96 = scmp.ne.s32.totalorder %s91, %s93
      %p97 = scmp.eq.s32.totalorder %s10, 0
      %p98 = por %p96, %p97
      %p99 = scmp.ne.s32.totalorder %s91, %s93
      %p100 = scmp.eq.s32.totalorder %s15, 2
      %p101 = por %p99, %p100
      %p102 = scmp.ne.s32.totalorder %s93, %s94
      %p103 = scmp.eq.s32.totalorder %s15, 0
      %p104 = por %p102, %p103
      %p105 = scmp.ne.s32.totalorder %s93, %s94
      %p106 = scmp.eq.s32.totalorder %s16, 2
      %p107 = por %p105, %p106
      %p109 = scmp.ne.s32.totalorder %s94, %s108
      %p110 = scmp.eq.s32.totalorder %s16, 0
      %p111 = por %p109, %p110
      %p112 = scmp.le.s32.totalorder 1, %s10
      %p113 = scmp.lt.s32.totalorder %s10, 4
      %p114 = pnand %p112, %p113
      %p115 = pneg %p114
      // Predicated region
      $region9: #{tpu_custom_call.1} parent=5 // pred_check
        _
      $region10: #{tpu_custom_call.1} parent=5 // pred_check_branch
        %117 = sbr.rel (%p114) target = $region12
      $region11: #{tpu_custom_call.1} parent=5 // pred_region
        %s118 = ssub.s32 %s10, 1
        // Predicated region
        $region13: #{tpu_custom_call.1} parent=11 // pred_check
          %p119 = pneg %p83
        $region14: #{tpu_custom_call.1} parent=11 // pred_check_branch
          %121 = sbr.rel (%p119) target = $region16
        $region15: #{tpu_custom_call.1} parent=11 // pred_region
          _
        $region16: #{tpu_custom_call.1} parent=11 // pred_fallthru
          _
      $region12: #{tpu_custom_call.1} parent=5 // pred_fallthru
        _
      %p122 = scmp.lt.s32.totalorder %s10, 3
      // Predicated region
      $region17: #{tpu_custom_call.1} parent=5 // pred_check
        %p123 = pneg %p122
      $region18: #{tpu_custom_call.1} parent=5 // pred_check_branch
        %125 = sbr.rel (%p123) target = $region20
      $region19: #{tpu_custom_call.1} parent=5 // pred_region
        // Predicated region
        $region21: #{tpu_custom_call.1} parent=19 // pred_check
          %p126 = pneg %p30
        $region22: #{tpu_custom_call.1} parent=19 // pred_check_branch
          %128 = sbr.rel (%p126) target = $region24
        $region23: #{tpu_custom_call.1} parent=19 // pred_region
          %p129 = scmp.lt.s32.totalorder %s10, 2
          %s130 = scalar_select %p129, %s10, 2
          %s131 = smul.addr %s130, 8
          %s132 = scalar_lea.vmem %s0, %s131
        $region24: #{tpu_custom_call.1} parent=19 // pred_fallthru
          _
        // Predicated region
        $region25: #{tpu_custom_call.1} parent=19 // pred_check
          %p133 = pneg %p56
        $region26: #{tpu_custom_call.1} parent=19 // pred_check_branch
          %135 = sbr.rel (%p133) target = $region28
        $region27: #{tpu_custom_call.1} parent=19 // pred_region
          %p136 = scmp.lt.s32.totalorder %s10, 2
          %s137 = scalar_select %p136, %s10, 2
          %s138 = smul.addr %s137, 8
          %s139 = scalar_lea.vmem %s1, %s138
        $region28: #{tpu_custom_call.1} parent=19 // pred_fallthru
          _
      $region20: #{tpu_custom_call.1} parent=5 // pred_fallthru
        _
      %p140 = scmp.le.s32.totalorder 1, %s10
      %p141 = scmp.lt.s32.totalorder %s10, 4
      %p142 = pnand %p140, %p141
      %p143 = pneg %p142
      // Predicated region
      $region29: #{tpu_custom_call.1} parent=5 // pred_check
        _
      $region30: #{tpu_custom_call.1} parent=5 // pred_check_branch
        %145 = sbr.rel (%p142) target = $region32
      $region31: #{tpu_custom_call.1} parent=5 // pred_region
        %s146 = ssub.s32 %s10, 1
        %p147 = scmp.lt.s32.totalorder %s15, 2
        %s148 = scalar_select %p147, %s15, 2
        %s149 = smul.addr %s148, 8
        %s150 = scalar_lea.vmem %s0, %s149
        %p151 = pneg %p36
        %p152 = pneg %p33
        %p153 = scmp.lt.s32.totalorder %s15, 2
        %s154 = scalar_select %p153, %s15, 2
        %s155 = smul.addr %s154, 8
        %s156 = scalar_lea.vmem %s1, %s155
        %p157 = pneg %p62
        %p158 = pneg %p59
        %p159 = pneg %p83
        %p160 = pneg %p80
        %p161 = pneg %p104
        %p162 = pneg %p101
        %p163 = scmp.lt.s32.totalorder %s15, 2
        %s164 = scalar_select %p163, %s15, 2
        %s165 = smul.addr %s164, 8
        %s166 = scalar_lea.vmem %s0, %s165
        %p167 = scmp.lt.s32.totalorder %s15, 2
        %s168 = scalar_select %p167, %s15, 2
        %s169 = smul.addr %s168, 8
        %s170 = scalar_lea.vmem %s1, %s169
        %p171 = scmp.eq.s32.totalorder %s15, 0
        // Predicated region
        $region33: #{tpu_custom_call.1} parent=31 // pred_check
          %p172 = pneg %p171
        $region34: #{tpu_custom_call.1} parent=31 // pred_check_branch
          %174 = sbr.rel (%p172) target = $region36
        $region35: #{tpu_custom_call.1} parent=31 // pred_region
          %vm175 = vcmask 0
          %176 = vst.msk [vmem:[#allocation2] sm:$0x1] %vm175, 0.0
          %177 = vst.msk [vmem:[#allocation3] sm:$0x1] %vm175, 0.0
        $region36: #{tpu_custom_call.1} parent=31 // pred_fallthru
          _
        %v178 = vld [vmem:[%s166] sm:$0xff]
        %v179 = vld [vmem:[%s170] sm:$0xff]
        %v180 = vld [vmem:[%s2] sm:$0x1]
        %v181 = vlaneseq
        %v182 = vshrl.u32 %v181, 7
        %s183 = smul.u32 %s15, 8
        %v184 = vstv %s183
        %v185 = vadd.s32 %v184, %v182
        %vm186 = vcmp.lt.s32.totalorder %v185, 20
        %vm187 = vcmask 261120
        %v188 = vsel %vm187, %v178, -inf
        %189 = vmax.xlane.f32.xlu0 %v188
        %v190 = vpop.xlane.xlu0 %189
        %v191 = vsub.f32 %v178, %v190
        %v192 = vmul.f32 %v191, 1.442695
        %v193 = vpow.pop %v192
        %v194 = vsel %vm187, %v193, 0.0
        %195 = vadd.xlane.f32.xlu0 %v194
        %v196 = vpop.xlane.xlu0 %195
        %v197 = vlog2.pop %v196
        %v198 = vmul.f32 %v197, 0.6931472
        %v199 = vlaneseq
        %v200 = vand.u32 %v199, 127
        %201 = vset.pattern.permute.xlu0 0
        %202 = vperm.xlu0 %201, %v179
        %v203 = vpop.permute.xlu0 %202
        %vm204 = vcmp.eq.s32.totalorder %v200, %v203
        %v205 = vsel %vm204, 1, 0
        %v206 = vcvt.s32.f32 %v205
        %v207 = vmul.f32 %v206, %v191
        %v208 = vsel %vm187, %v207, 0.0
        %209 = vadd.xlane.f32.xlu0 %v208
        %v210 = vpop.xlane.xlu0 %209
        %v212 = vlaneseq
        %v213 = vshrl.u32 %v212, 7
        %v214 = vsub.s32 0, %v213
        %v215 = vrot.slane %v180, %v214
        %v217 = vmul.f32 %v206, %v215
        %v218 = vsel %vm187, %v217, 0.0
        %219 = vadd.xlane.f32.xlu0 %v218
        %v220 = vpop.xlane.xlu0 %219
        %v221 = vsub.f32 %v198, %v210
        %v222 = vsel %vm186, %v221, 0.0
        %v223 = vsel %vm186, %v220, 0.0
        %v224 = vld [vmem:[#allocation2] sm:$0x1]
        %v225 = vmul.f32 %v223, %v222
        %vm226 = vcmask 7168
        %v227 = vsel %vm226, %v225, 0.0
        %228 = vadd.xlane.f32.xlu0 %v227
        %v229 = vpop.xlane.xlu0 %228
        %v230 = vrot.slane %v229, 4
        %v231 = vadd.f32 %v229, %v230
        %v232 = vrot.slane %v231, 2
        %v233 = vadd.f32 %v231, %v232
        %v234 = vrot.slane %v233, 1
        %v235 = vadd.f32 %v233, %v234
        %s236 = vtos %v235
        %v237 = vstv %s236
        %v238 = vadd.f32 %v224, %v237
        %vm239 = vcmask 0
        %240 = vst.msk [vmem:[#allocation2] sm:$0x1] %vm239, %v238
        %v241 = vld [vmem:[#allocation3] sm:$0x1]
        %v242 = vsel %vm226, %v223, 0.0
        %243 = vadd.xlane.f32.xlu0 %v242
        %v244 = vpop.xlane.xlu0 %243
        %v245 = vrot.slane %v244, 4
        %v246 = vadd.f32 %v244, %v245
        %v247 = vrot.slane %v246, 2
        %v248 = vadd.f32 %v246, %v247
        %v249 = vrot.slane %v248, 1
        %v250 = vadd.f32 %v248, %v249
        %s251 = vtos %v250
        %v252 = vstv %s251
        %v253 = vadd.f32 %v241, %v252
        %254 = vst.msk [vmem:[#allocation3] sm:$0x1] %vm239, %v253
        %p255 = scmp.eq.s32.totalorder %s15, 2
        // Predicated region
        $region37: #{tpu_custom_call.1} parent=31 // pred_check
          %p256 = pneg %p255
        $region38: #{tpu_custom_call.1} parent=31 // pred_check_branch
          %258 = sbr.rel (%p256) target = $region40
        $region39: #{tpu_custom_call.1} parent=31 // pred_region
          %v259 = vld [vmem:[#allocation2] sm:$0x1]
          %v260 = vld [vmem:[#allocation3] sm:$0x1]
          %v261 = vrcp.pop %v260
          %v262 = vmul.f32 %v259, %v261
          %v263 = vsub.f32 0.0, %v262
          %v264 = vmul.f32 %v263, 1.442695
          %v265 = vpow.pop %v264
          %v266 = vsub.f32 1.0, %v265
          %v267 = vmul.f32 %v266, %v266
          %v268 = vmul.f32 %v267, %v262
          %269 = vst.msk [vmem:[#allocation4] sm:$0x1] %vm239, %v268
        $region40: #{tpu_custom_call.1} parent=31 // pred_fallthru
          _
        // Predicated region
        $region41: #{tpu_custom_call.1} parent=31 // pred_check
          %p270 = pneg %p101
        $region42: #{tpu_custom_call.1} parent=31 // pred_check_branch
          %272 = sbr.rel (%p270) target = $region44
        $region43: #{tpu_custom_call.1} parent=31 // pred_region
          %s274 = ssub.s32 16, 16
          %275 = vsyncadd [#allocation5], %s274
          %s277 = sshll.u32 [#allocation4], 4
          %s278 = int_to_ptr.vmem [resolvable:$true] %s277
          %280 = dma.vmem_to_hbm [thread:$0]  %s278, 16, %s3, [#allocation5]
        $region44: #{tpu_custom_call.1} parent=31 // pred_fallthru
          _
        // Predicated region
        $region45: #{tpu_custom_call.1} parent=31 // pred_check
          %p281 = pneg %p101
        $region46: #{tpu_custom_call.1} parent=31 // pred_check_branch
          %283 = sbr.rel (%p281) target = $region48
        $region47: #{tpu_custom_call.1} parent=31 // pred_region
          %284 = dma.done [#allocation5], 16
        $region48: #{tpu_custom_call.1} parent=31 // pred_fallthru
          _
      $region32: #{tpu_custom_call.1} parent=5 // pred_fallthru
        _
      %p285 = scmp.le.s32.totalorder 2, %s10
      // Predicated region
      $region49: #{tpu_custom_call.1} parent=5 // pred_check
        %p286 = pneg %p285
      $region50: #{tpu_custom_call.1} parent=5 // pred_check_branch
        %288 = sbr.rel (%p286) target = $region52
      $region51: #{tpu_custom_call.1} parent=5 // pred_region
        %s289 = ssub.s32 %s10, 2
      $region52: #{tpu_custom_call.1} parent=5 // pred_fallthru
        _
    $region6: #{tpu_custom_call.1} parent=1 // loop_footer
      %s14 = sadd.s32 1, %s10
    $region7: #{tpu_custom_call.1} parent=1 // loop_footer_branch
      %9 = sbr.rel target = $region3
    $region8: #{tpu_custom_call.1} parent=1 // loop_exit
      _
    %290 = vsyncpa [#allocation5], 1
    %s291 = scalar_lea.sflag [#allocation5], 1
    %292 = vsyncpa %s291, 1

</llo_original>
